<compile_context>
chip_gen: v5e
topology: v5e:2x2
jax: 0.10.0
libtpu: 0.0.40
codegen_flags: <defaults>
</compile_context>

<pallas_src>
import jax
import jax.numpy as jnp
from jax.experimental import pallas as pl
from jax.experimental.pallas import tpu as pltpu

# ------------------------- config (mirrors cfg of the PyTorch module) -------
TIMESTEPS = 1000          # cfg.timesteps
SNR_CLIP = 5.0            # cfg.snr_clip
CLIP_NOISE = 20.0         # cfg.clip_noise
CUM_SNR_DECAY = 0.96      # cfg.cum_snr_decay (unused: use_cum_snr=False)
P2_GAMMA = 0.0            # cfg.p2_loss_weight_gamma
P2_K = 1.0                # cfg.p2_loss_weight_k
OBJECTIVE = "pred_noise"  # cfg.objective
USE_SNR = False           # cfg.use_snr
USE_CUM_SNR = False       # cfg.use_cum_snr
SELF_CONDITION = False    # cfg.self_condition (the random()<0.5 branch is inactive)
NETWORK_SIZE = 64         # cfg.network_size (TransitionMlp hidden width)

BATCH = 8
X_DIM = 16                # x_shape = (16,)  -> 1-D branch
Z_DIM = 32                # z_shape = (32,)
EXTERNAL_COND_DIM = 0

NUM_LANES = 128
MAX_TILE_ROWS = 1024      # per-grid-step row tile ceiling (multiple of 8)
MIN_PALLAS_ROWS = 64      # below this, the single-step API uses the fused XLA path

# Flip these to jnp.bfloat16 on v6e/v7x for ~2x DMA bytes / ~3x MXU throughput.
# Kept f32 by default: exact vs the f32 reference, and v5e (no bf16 VPU) safe.
SLAB_DTYPE = jnp.float32
MATMUL_DTYPE = jnp.float32

# ---- input-slab lane layout (128-wide, lane-dense) ---------------------------
C_X = 0
C_Z = C_X + X_DIM            # 16
C_T = C_Z + Z_DIM            # 48  (t / timesteps feature for the MLP stand-in)
C_ONE = C_T + 1              # 49  (constant 1.0 -> folds b1 / carries layer-2 bias)
C_NOISED = C_ONE + 1         # 50  noised_x_next (q_sample done in the prologue)
C_NOISE = C_NOISED + X_DIM   # 66
C_SREC = C_NOISE + X_DIM     # 82  sqrt_recip_alphas_cumprod[noise_level]
C_SRECM1 = C_SREC + 1        # 83  sqrt_recipm1_alphas_cumprod[noise_level]
IN_USED = C_SRECM1 + 1       # 84  (rest of the 128 lanes is zero padding)
MLP_IN = C_ONE + 1           # 50  lanes that actually feed layer 1

H_DIM = NETWORK_SIZE         # 64
H_AUG = H_DIM + 8            # 72  (column 64 carries the folded "1.0" through relu)
K1 = NUM_LANES               # 128 fused layer-1 contraction dim
WDB_ROWS = 40                # wd rows 0:32, bd row 32, zero pad to 40

# ---- output-slab lane layout --------------------------------------------------
O_Z = 0                      # 0:32   z_next_pred
O_XS = O_Z + Z_DIM           # 32:48  x_next_pred (x_start)
O_LOSS = O_XS + X_DIM        # 48:64  loss (unreduced, weighted)
OUT_USED = O_LOSS + X_DIM    # 64     (noised_x_next is returned from the prologue)


# ------------------------- diffusion buffers (host-side, plain JAX) ---------
def linear_beta_schedule(timesteps):
    scale = 1000.0 / timesteps
    return jnp.linspace(scale * 1e-4, scale * 2e-2, timesteps, dtype=jnp.float32)


def build_buffers(timesteps):
    betas = linear_beta_schedule(timesteps)
    alphas = 1.0 - betas
    alphas_cumprod = jnp.cumprod(alphas)
    alphas_cumprod_prev = jnp.concatenate(
        [jnp.ones((1,), jnp.float32), alphas_cumprod[:-1]])
    posterior_variance = betas * (1.0 - alphas_cumprod_prev) / (1.0 - alphas_cumprod)
    snr = alphas_cumprod / (1.0 - alphas_cumprod)
    bufs = dict(
        betas=betas,
        alphas_cumprod=alphas_cumprod,
        alphas_cumprod_prev=alphas_cumprod_prev,
        sqrt_alphas_cumprod=jnp.sqrt(alphas_cumprod),
        sqrt_one_minus_alphas_cumprod=jnp.sqrt(1.0 - alphas_cumprod),
        log_one_minus_alphas_cumprod=jnp.log(1.0 - alphas_cumprod),
        sqrt_recip_alphas_cumprod=jnp.sqrt(1.0 / alphas_cumprod),
        sqrt_recipm1_alphas_cumprod=jnp.sqrt(1.0 / alphas_cumprod - 1.0),
        posterior_variance=posterior_variance,
        posterior_log_variance_clipped=jnp.log(jnp.clip(posterior_variance, 1e-20)),
        posterior_mean_coef1=betas * jnp.sqrt(alphas_cumprod_prev) / (1.0 - alphas_cumprod),
        posterior_mean_coef2=(1.0 - alphas_cumprod_prev) * jnp.sqrt(alphas) / (1.0 - alphas_cumprod),
        p2_loss_weight=(P2_K + snr) ** (-P2_GAMMA),
        snr=snr,
        clipped_snr=jnp.clip(snr, max=SNR_CLIP),
    )
    return {k: v.astype(jnp.float32) for k, v in bufs.items()}


# ------------------------- deterministic parameter init ---------------------
def build_params(key):
    ks = jax.random.split(key, 8)
    n = lambda k, s, sc=0.1: sc * jax.random.normal(k, s, dtype=jnp.float32)
    # TODO(synk): the exact TransitionMlp architecture is not given in the source;
    # a 2-layer MLP conditioned on (x, z, t/timesteps) is used as a stand-in.
    return dict(
        wx=n(ks[0], (X_DIM, NETWORK_SIZE)),
        wz=n(ks[1], (Z_DIM, NETWORK_SIZE)),
        wt=n(ks[2], (1, NETWORK_SIZE)),
        b1=n(ks[3], (1, NETWORK_SIZE), 0.05),
        w2=n(ks[4], (NETWORK_SIZE, Z_DIM)),
        b2=n(ks[5], (1, Z_DIM), 0.05),
        # TODO(synk): the 1-D branch declares nn.Linear(z_channel, x_channel) but
        # predict_diffusion_target calls it with 3 args; here it is applied to
        # z_cond (== z_next), matching the Linear's declared in/out dims.
        wd=n(ks[6], (Z_DIM, X_DIM)),
        bd=n(ks[7], (1, X_DIM), 0.05),
    )


# ------------------------- host-side packing of weights ---------------------
def pack_params(params):
    """Collapse all weights/biases into 3 pre-padded blobs (one-time cost)."""
    w1 = jnp.zeros((K1, H_AUG), jnp.float32)
    w1 = w1.at[C_X:C_X + X_DIM, :H_DIM].set(params["wx"])
    w1 = w1.at[C_Z:C_Z + Z_DIM, :H_DIM].set(params["wz"])
    w1 = w1.at[C_T, :H_DIM].set(params["wt"][0])
    w1 = w1.at[C_ONE, :H_DIM].set(params["b1"][0])
    # pass the constant-1 input column through to h[:, 64] (relu(1) == 1) so
    # layer-2's bias folds into its matmul as row 64 of W2B.
    w1 = w1.at[C_ONE, H_DIM].set(1.0)
    # rows C_NOISED.. stay zero, so the fused dot over all 128 lanes is exact.

    w2b = jnp.zeros((H_AUG, Z_DIM), jnp.float32)
    w2b = w2b.at[:H_DIM, :].set(params["w2"])
    w2b = w2b.at[H_DIM, :].set(params["b2"][0])

    wdb = jnp.zeros((WDB_ROWS, X_DIM), jnp.float32)
    wdb = wdb.at[:Z_DIM, :].set(params["wd"])
    wdb = wdb.at[Z_DIM, :].set(params["bd"][0])
    return w1, w2b, wdb


# ------------------------- tiling helpers ------------------------------------
def _round_up(n, m):
    return ((n + m - 1) // m) * m


def _tile_and_grid(rows):
    """Pick a row tile targeting <=MAX_TILE_ROWS rows/step with >=2 (even when
    possible) grid steps so both v7x TensorCores get work."""
    rows8 = _round_up(max(int(rows), 1), 8)
    if rows8 <= 16:
        return rows8, 1
    steps = max(2, -(-rows8 // MAX_TILE_ROWS))
    if steps % 2:
        steps += 1
    tile = _round_up(-(-rows8 // steps), 8)
    steps = -(-rows8 // tile)
    return tile, steps


# ------------------------- the Pallas kernel (hot path) ---------------------
def _mm(a, b):
    return jnp.dot(a.astype(MATMUL_DTYPE), b.astype(MATMUL_DTYPE),
                   preferred_element_type=jnp.float32)


def _fused_kernel(inp_ref, w1_ref, w2b_ref, wdb_ref, out_ref):
    # --- rnn_model (TransitionMlp stand-in): one fused MXU dot for layer 1 ---
    # W1 rows hold wx / wz / wt / b1; all other rows (incl. the diffusion lanes)
    # are zero, so the whole 128-lane tile is multiplied directly.  Column 64
    # carries the constant 1.0 through the relu for layer-2 bias folding.
    h = _mm(inp_ref[...], w1_ref[...])                            # (TR, 72)
    h = jnp.maximum(h, 0.0)
    z_next = jnp.tanh(_mm(h, w2b_ref[...]))                       # (TR, 32)

    # --- denoising_network: Linear(z_next); objective == 'pred_noise' ---
    pred = _mm(z_next, wdb_ref[:Z_DIM, :]) + wdb_ref[Z_DIM:Z_DIM + 1, :]
    pred_noise = jnp.clip(pred, -CLIP_NOISE, CLIP_NOISE)          # (TR, 16)

    # --- diffusion elementwise: slice straight from the ref (free views; keeps
    #     live ranges narrow at large TILE_ROWS) ---
    noised = inp_ref[:, C_NOISED:C_NOISED + X_DIM].astype(jnp.float32)
    noise = inp_ref[:, C_NOISE:C_NOISE + X_DIM].astype(jnp.float32)
    srec = inp_ref[:, C_SREC:C_SREC + 1].astype(jnp.float32)
    srecm1 = inp_ref[:, C_SRECM1:C_SRECM1 + 1].astype(jnp.float32)

    # predict_start_from_noise (applied to the noised x_next)
    x_start = srec * noised - srecm1 * pred_noise
    # unreduced MSE (vs unclipped model_out) * loss_weight; with use_snr=False
    # and use_cum_snr=False, loss_weight == snr_clip * 0.5 (module else-branch).
    loss = (pred - noise) ** 2 * (SNR_CLIP * 0.5)

    # --- one lane-dense 128-wide output slab, single unmasked full-width store ---
    pad = jnp.zeros((out_ref.shape[0], NUM_LANES - OUT_USED), jnp.float32)
    out_ref[...] = jnp.concatenate([z_next, x_start, loss, pad], axis=1)


def _forward_pallas(slab, w1, w2b, wdb, tile, steps):
    padded = tile * steps
    return pl.pallas_call(
        _fused_kernel,
        out_shape=jax.ShapeDtypeStruct((padded, NUM_LANES), jnp.float32),
        grid=(steps,),
        in_specs=[
            # row slab: row-tiled; optionally sweep pipeline_mode=pl.Buffered(3)
            pl.BlockSpec((tile, NUM_LANES), lambda i: (i, 0)),
            # weight blobs: constant index_map => DMA'd once, resident in VMEM
            pl.BlockSpec((K1, H_AUG), lambda i: (0, 0)),
            pl.BlockSpec((H_AUG, Z_DIM), lambda i: (0, 0)),
            pl.BlockSpec((WDB_ROWS, X_DIM), lambda i: (0, 0)),
        ],
        out_specs=pl.BlockSpec((tile, NUM_LANES), lambda i: (i, 0)),
        compiler_params=pltpu.CompilerParams(
            dimension_semantics=("parallel",)),   # dual-TC sharding on v7x
    )(slab, w1, w2b, wdb)


# ------------------------- fully-jitted row path ------------------------------
def _forward_rows_impl(x, z, x_next, noise, t_feat, sac, som, srec, srecm1,
                       w1, w2b, wdb):
    rows = x.shape[0]
    # q_sample in the fused XLA prologue (f32); noised is returned directly and
    # also packed into the slab for predict_start_from_noise.
    noised = sac * x_next + som * noise

    tile, steps = _tile_and_grid(rows)
    padded = tile * steps
    used = jnp.concatenate(
        [x, z, t_feat, jnp.ones((rows, 1), jnp.float32),
         noised, noise, srec, srecm1], axis=1).astype(SLAB_DTYPE)   # (rows, 84)
    slab = jnp.zeros((padded, NUM_LANES), SLAB_DTYPE).at[:rows, :IN_USED].set(used)

    out = _forward_pallas(slab, w1, w2b, wdb, tile, steps)

    z_next = out[:rows, O_Z:O_Z + Z_DIM]
    x_start = out[:rows, O_XS:O_XS + X_DIM]
    loss = out[:rows, O_LOSS:O_LOSS + X_DIM]
    return z_next, x_start, loss, noised


_forward_rows_pallas = jax.jit(_forward_rows_impl)


@jax.jit
def _forward_rows_xla(x, z, x_next, noise, t_feat, sac, som, srec, srecm1,
                      w1, w2b, wdb):
    """Fused pure-XLA path for tiny row counts (padding a Pallas tile with >87%
    zeros would be slower).  Uses the same packed blobs as the kernel."""
    noised = sac * x_next + som * noise
    feats = jnp.concatenate(
        [x, z, t_feat, jnp.ones((x.shape[0], 1), jnp.float32)], axis=1)
    h = jnp.maximum(feats @ w1[:MLP_IN, :], 0.0)
    z_next = jnp.tanh(h @ w2b)
    pred = z_next @ wdb[:Z_DIM, :] + wdb[Z_DIM, :]
    pred_noise = jnp.clip(pred, -CLIP_NOISE, CLIP_NOISE)
    x_start = srec * noised - srecm1 * pred_noise
    loss = (pred - noise) ** 2 * (SNR_CLIP * 0.5)
    return z_next, x_start, loss, noised


# ------------------------- host-side glue (sampling / gathers) --------------
def prepare_inputs(x, z, t, x_next, buffers, key, deterministic_noise_level=None):
    batch = z.shape[0]
    k_lvl, k_noise = jax.random.split(key)
    if deterministic_noise_level is None:
        noise_level = jax.random.randint(k_lvl, (batch,), 0, TIMESTEPS)
    elif isinstance(deterministic_noise_level, float):
        lvl = round(deterministic_noise_level * (TIMESTEPS - 1))
        noise_level = jnp.full((batch,), lvl, dtype=jnp.int32)
    else:
        lvl = (deterministic_noise_level if deterministic_noise_level >= 0
               else TIMESTEPS + deterministic_noise_level)
        noise_level = jnp.full((batch,), lvl, dtype=jnp.int32)

    noise = jnp.clip(jax.random.normal(k_noise, x_next.shape, dtype=jnp.float32),
                     -CLIP_NOISE, CLIP_NOISE)

    # extract(buffer, noise_level, shape) -> per-row (R, 1) coefficients (glue)
    sac = buffers["sqrt_alphas_cumprod"][noise_level][:, None]
    som = buffers["sqrt_one_minus_alphas_cumprod"][noise_level][:, None]
    srec = buffers["sqrt_recip_alphas_cumprod"][noise_level][:, None]
    srecm1 = buffers["sqrt_recipm1_alphas_cumprod"][noise_level][:, None]

    t_feat = jnp.full((batch, 1), float(t) / TIMESTEPS, dtype=jnp.float32)
    return (x, z, x_next, noise, t_feat, sac, som, srec, srecm1)


def run_forward_rows(raw_inputs, packed_weights):
    """raw_inputs: tuple of (R, .) arrays as returned by prepare_inputs
    (possibly many diffusion steps concatenated along rows).  Always uses the
    Pallas kernel."""
    return _forward_rows_pallas(*raw_inputs, *packed_weights)


def diffusion_transition_forward(x, z, t, x_next, packed_weights, buffers, key,
                                 deterministic_noise_level=None):
    """Single-step API mirroring the PyTorch forward.  For throughput, stack
    many steps into the row dimension and call run_forward_rows instead."""
    raw = prepare_inputs(x, z, t, x_next, buffers, key, deterministic_noise_level)
    if raw[0].shape[0] < MIN_PALLAS_ROWS:
        z_next, x_start, loss, noised = _forward_rows_xla(*raw, *packed_weights)
    else:
        z_next, x_start, loss, noised = run_forward_rows(raw, packed_weights)
    # matches the PyTorch return: (z_next_pred, x_next_pred, loss, cum_snr=None, noised_x_next)
    return z_next, x_start, loss, None, noised


# ------------------------- pure-JAX reference (for the smoke check) ---------
@jax.jit
def _forward_ref(x, z, x_next, noise, t_feat, sac, som, srec, srecm1, params):
    noised = sac * x_next + som * noise
    h = x @ params["wx"] + z @ params["wz"] + t_feat * params["wt"] + params["b1"]
    h = jnp.maximum(h, 0.0)
    z_next = jnp.tanh(h @ params["w2"] + params["b2"])
    pred = z_next @ params["wd"] + params["bd"]
    pred_noise = jnp.clip(pred, -CLIP_NOISE, CLIP_NOISE)
    x_start = srec * noised - srecm1 * pred_noise
    loss = (pred - noise) ** 2 * (SNR_CLIP * 0.5)
    return z_next, x_start, loss, noised


def _check_outputs(got, ref, srecm1, label):
    for g, r in zip(got, ref):
        assert g.shape == r.shape and g.dtype == r.dtype, f"{label}: shape/dtype"
    z_g, xs_g, ls_g, nz_g = got
    z_r, xs_r, ls_r, nz_r = ref
    assert jnp.allclose(z_g, z_r, rtol=1e-3, atol=1e-3), f"{label}: z_next mismatch"
    assert jnp.allclose(ls_g, ls_r, rtol=1e-3, atol=2e-3), f"{label}: loss mismatch"
    assert jnp.allclose(nz_g, nz_r, rtol=1e-5, atol=1e-5), f"{label}: noised mismatch"
    # x_start error is physically amplified by sqrt_recipm1_alphas_cumprod (up to
    # ~150 near t~T), so use an amplification-aware bound instead of a flat atol;
    # any lane-packing / offset bug would still blow through this by >100x.
    tol = 1e-3 + 2e-3 * jnp.abs(xs_r) + 1e-3 * srecm1
    assert bool(jnp.all(jnp.abs(xs_g - xs_r) <= tol)), f"{label}: x_start mismatch"


# ------------------------- main ---------------------------------------------
if __name__ == "__main__":
    root = jax.random.PRNGKey(0)
    k_param, k_roll = jax.random.split(root)

    params = build_params(k_param)
    buffers = build_buffers(TIMESTEPS)
    packed = pack_params(params)

    # ---- build a small rollout: T_STACK independent steps x BATCH rows -----
    T_STACK = 16
    step_keys = jax.random.split(k_roll, T_STACK)
    raw_steps = []
    for s in range(T_STACK):
        kx, kz, kxn, kf = jax.random.split(step_keys[s], 4)
        x = jax.random.normal(kx, (BATCH, X_DIM), dtype=jnp.float32)
        z = jax.random.normal(kz, (BATCH, Z_DIM), dtype=jnp.float32)
        x_next = jax.random.normal(kxn, (BATCH, X_DIM), dtype=jnp.float32)
        raw_steps.append(prepare_inputs(x, z, s, x_next, buffers, kf))

    # stack all steps into the row dimension -> ONE pallas_call for the rollout
    # (128 rows here -> adaptive tiling picks a 2-step "parallel" grid)
    stacked = tuple(jnp.concatenate([rs[i] for rs in raw_steps], axis=0)
                    for i in range(len(raw_steps[0])))            # (T*B, .) each
    got_stacked = run_forward_rows(stacked, packed)
    jax.block_until_ready(got_stacked)
    _check_outputs(got_stacked, _forward_ref(*stacked, params), stacked[8],
                   "stacked")

    # small-row Pallas call (exercises padding + single-tile grid path)
    small = raw_steps[0]
    got_small = run_forward_rows(small, packed)
    jax.block_until_ready(got_small)
    _check_outputs(got_small, _forward_ref(*small, params), small[8],
                   "small-pallas")

    # single-step API (mirrors the PyTorch forward; tiny batch -> gated XLA path)
    kx, kz, kxn, kf = jax.random.split(jax.random.PRNGKey(1), 4)
    x1 = jax.random.normal(kx, (BATCH, X_DIM), dtype=jnp.float32)
    z1 = jax.random.normal(kz, (BATCH, Z_DIM), dtype=jnp.float32)
    xn1 = jax.random.normal(kxn, (BATCH, X_DIM), dtype=jnp.float32)
    z_next1, x_start1, loss1, cum_snr1, noised1 = diffusion_transition_forward(
        x1, z1, 3, xn1, packed, buffers, kf)
    jax.block_until_ready((z_next1, x_start1, loss1, noised1))
    raw1 = prepare_inputs(x1, z1, 3, xn1, buffers, kf)
    _check_outputs((z_next1, x_start1, loss1, noised1),
                   _forward_ref(*raw1, params), raw1[8], "single-step")
    assert cum_snr1 is None

    print("KERNEL_OK")
</pallas_src>

<mosaic_0001>
module attributes {stable_mosaic.version = 11 : i64} {
  func.func @_fused_kernel(%arg0: i32, %arg1: memref<64x128xf32, #tpu.memory_space<vmem>>, %arg2: memref<128x72xf32, #tpu.memory_space<vmem>>, %arg3: memref<72x32xf32, #tpu.memory_space<vmem>>, %arg4: memref<40x16xf32, #tpu.memory_space<vmem>>, %arg5: memref<64x128xf32, #tpu.memory_space<vmem>>) attributes {dimension_semantics = [#tpu.dimension_semantics<parallel>], iteration_bounds = array<i64: 2>, scalar_prefetch = 0 : i64, scratch_operands = 0 : i64, tpu.core_type = #tpu.core_type<tc>, window_params = [{transform_indices = @transform_0, window_bounds = array<i64: 64, 128>}, {pipeline_mode = #tpu.pipeline_mode<synchronous>, transform_indices = @transform_1, window_bounds = array<i64: 128, 72>}, {pipeline_mode = #tpu.pipeline_mode<synchronous>, transform_indices = @transform_2, window_bounds = array<i64: 72, 32>}, {pipeline_mode = #tpu.pipeline_mode<synchronous>, transform_indices = @transform_3, window_bounds = array<i64: 40, 16>}, {transform_indices = @transform_4, window_bounds = array<i64: 64, 128>}]} {
    %c0 = arith.constant 0 : index
    %c0_0 = arith.constant 0 : index
    %0 = vector.load %arg1[%c0, %c0_0] : memref<64x128xf32, #tpu.memory_space<vmem>>, vector<64x128xf32>
    %c0_1 = arith.constant 0 : index
    %c0_2 = arith.constant 0 : index
    %1 = vector.load %arg2[%c0_1, %c0_2] : memref<128x72xf32, #tpu.memory_space<vmem>>, vector<128x72xf32>
    %cst = arith.constant dense<0.000000e+00> : vector<64x72xf32>
    %2 = tpu.matmul %0, %1, %cst {dimension_numbers = #tpu.dot_dimension_numbers<[1], [0], [0], [1], [0, 0, 1, 1], [], []>} : vector<64x128xf32>, vector<128x72xf32>, vector<64x72xf32> -> vector<64x72xf32>
    %cst_3 = arith.constant 0.000000e+00 : f32
    %3 = vector.broadcast %cst_3 : f32 to vector<64x72xf32>
    %4 = arith.maximumf %2, %3 : vector<64x72xf32>
    %c0_4 = arith.constant 0 : index
    %c0_5 = arith.constant 0 : index
    %5 = vector.load %arg3[%c0_4, %c0_5] : memref<72x32xf32, #tpu.memory_space<vmem>>, vector<72x32xf32>
    %cst_6 = arith.constant dense<0.000000e+00> : vector<64x32xf32>
    %6 = tpu.matmul %4, %5, %cst_6 {dimension_numbers = #tpu.dot_dimension_numbers<[1], [0], [0], [1], [0, 0, 1, 1], [], []>} : vector<64x72xf32>, vector<72x32xf32>, vector<64x32xf32> -> vector<64x32xf32>
    %7 = math.tanh %6 : vector<64x32xf32>
    %c0_7 = arith.constant 0 : index
    %c0_8 = arith.constant 0 : index
    %8 = vector.load %arg4[%c0_7, %c0_8] : memref<40x16xf32, #tpu.memory_space<vmem>>, vector<32x16xf32>
    %cst_9 = arith.constant dense<0.000000e+00> : vector<64x16xf32>
    %9 = tpu.matmul %7, %8, %cst_9 {dimension_numbers = #tpu.dot_dimension_numbers<[1], [0], [0], [1], [0, 0, 1, 1], [], []>} : vector<64x32xf32>, vector<32x16xf32>, vector<64x16xf32> -> vector<64x16xf32>
    %c32 = arith.constant 32 : index
    %c0_10 = arith.constant 0 : index
    %10 = vector.load %arg4[%c32, %c0_10] : memref<40x16xf32, #tpu.memory_space<vmem>>, vector<1x16xf32>
    %11 = vector.broadcast %10 : vector<1x16xf32> to vector<64x16xf32>
    %12 = arith.addf %9, %11 : vector<64x16xf32>
    %cst_11 = arith.constant -2.000000e+01 : f32
    %cst_12 = arith.constant 2.000000e+01 : f32
    %13 = vector.broadcast %cst_11 : f32 to vector<64x16xf32>
    %14 = arith.maximumf %13, %12 : vector<64x16xf32>
    %15 = vector.broadcast %cst_12 : f32 to vector<64x16xf32>
    %16 = arith.minimumf %15, %14 : vector<64x16xf32>
    %c0_13 = arith.constant 0 : index
    %c50 = arith.constant 50 : index
    %17 = vector.load %arg1[%c0_13, %c50] : memref<64x128xf32, #tpu.memory_space<vmem>>, vector<64x16xf32>
    %c0_14 = arith.constant 0 : index
    %c66 = arith.constant 66 : index
    %18 = vector.load %arg1[%c0_14, %c66] : memref<64x128xf32, #tpu.memory_space<vmem>>, vector<64x16xf32>
    %c0_15 = arith.constant 0 : index
    %c82 = arith.constant 82 : index
    %19 = vector.load %arg1[%c0_15, %c82] : memref<64x128xf32, #tpu.memory_space<vmem>>, vector<64x1xf32>
    %c0_16 = arith.constant 0 : index
    %c83 = arith.constant 83 : index
    %20 = vector.load %arg1[%c0_16, %c83] : memref<64x128xf32, #tpu.memory_space<vmem>>, vector<64x1xf32>
    %21 = vector.broadcast %19 : vector<64x1xf32> to vector<64x16xf32>
    %22 = arith.mulf %21, %17 : vector<64x16xf32>
    %23 = vector.broadcast %20 : vector<64x1xf32> to vector<64x16xf32>
    %24 = arith.mulf %23, %16 : vector<64x16xf32>
    %25 = arith.subf %22, %24 : vector<64x16xf32>
    %26 = arith.subf %12, %18 : vector<64x16xf32>
    %27 = arith.mulf %26, %26 : vector<64x16xf32>
    %cst_17 = arith.constant 2.500000e+00 : f32
    %28 = vector.broadcast %cst_17 : f32 to vector<64x16xf32>
    %29 = arith.mulf %27, %28 : vector<64x16xf32>
    %cst_18 = arith.constant 0.000000e+00 : f32
    %30 = vector.broadcast %cst_18 : f32 to vector<64x64xf32>
    %31 = tpu.concatenate %7, %25, %29, %30 in 1 : vector<64x32xf32>, vector<64x16xf32>, vector<64x16xf32>, vector<64x64xf32> -> vector<64x128xf32>
    %c0_19 = arith.constant 0 : index
    %c0_20 = arith.constant 0 : index
    %32 = vector.load %arg5[%c0_19, %c0_20] : memref<64x128xf32, #tpu.memory_space<vmem>>, vector<64x128xf32>
    tpu.vector_store %arg5[%c0_19, %c0_20], %31 {strides = array<i32>} : memref<64x128xf32, #tpu.memory_space<vmem>>, vector<64x128xf32>,
    return
  }
  func.func @transform_0(%arg0: i32) -> (i32, i32) {
    %c0_i32 = arith.constant 0 : i32
    %c0_i32_0 = arith.constant 0 : i32
    return %arg0, %c0_i32 : i32, i32
  }
  func.func @transform_1(%arg0: i32) -> (i32, i32) {
    %c0_i32 = arith.constant 0 : i32
    %c0_i32_0 = arith.constant 0 : i32
    %c0_i32_1 = arith.constant 0 : i32
    return %c0_i32, %c0_i32_0 : i32, i32
  }
  func.func @transform_2(%arg0: i32) -> (i32, i32) {
    %c0_i32 = arith.constant 0 : i32
    %c0_i32_0 = arith.constant 0 : i32
    %c0_i32_1 = arith.constant 0 : i32
    return %c0_i32, %c0_i32_0 : i32, i32
  }
  func.func @transform_3(%arg0: i32) -> (i32, i32) {
    %c0_i32 = arith.constant 0 : i32
    %c0_i32_0 = arith.constant 0 : i32
    %c0_i32_1 = arith.constant 0 : i32
    return %c0_i32, %c0_i32_0 : i32, i32
  }
  func.func @transform_4(%arg0: i32) -> (i32, i32) {
    %c0_i32 = arith.constant 0 : i32
    %c0_i32_0 = arith.constant 0 : i32
    return %arg0, %c0_i32 : i32, i32
  }
}

</mosaic_0001>

<llo_original>
// kernel: _forward_rows_impl.1
$region0: #{_forward_rows_impl.1}
  #allocation0 [shape = 'u32[]', space=smem, size = 0x4, offset = 0x4, fixed_abs, tag = 'smem constant byte address 0x4 - core index']
  #allocation1 [shape = 'u32[72,128]{1,0:T(1,128)}', space=vmem, size = 0x9000, scoped, tag = 'internal scratch']
  %s0 = inlined_call_operand.vmem [shape: f32[128,128], index: 0, kind: input, shape index: {}]
  %s1 = inlined_call_operand.vmem [shape: f32[128,72], index: 1, kind: input, shape index: {}]
  %s2 = inlined_call_operand.vmem [shape: f32[72,32], index: 2, kind: input, shape index: {}]
  %s3 = inlined_call_operand.vmem [shape: f32[40,16], index: 3, kind: input, shape index: {}]
  %s4 = inlined_call_operand.vmem [shape: f32[128,128], index: 4, kind: output, shape index: {}]
  %s5 = sld [smem:[#allocation0]]
  $region49: #{_forward_rows_impl.1} parent=0
    _
  %s7 = ssub.s32 1, %s5
  %s8 = scalar_select 0, %s7, %s5
  loop: start=0, step=1, limit=4
  $region2: #{_forward_rows_impl.1} parent=0 // loop_pre_header
    _
  $region3: #{_forward_rows_impl.1} parent=0 // loop_header
    %s10 = sphi 0, %s14
    %p11 = scmp.ge.s32.totalorder %s10, 4
    %s20 = sphi 0, %s22
    %s23 = sphi 0, %s20
    %s24 = sphi 0, %s23
    %s40 = sphi 0, %s24
    %s44 = sphi 0, %s44
    %s46 = sphi 0, %s44
    %s47 = sphi 0, %s46
    %s61 = sphi 0, %s47
    %s65 = sphi 0, %s65
    %s67 = sphi 0, %s65
    %s68 = sphi 0, %s67
    %s82 = sphi 0, %s68
    %s86 = sphi 0, %s86
    %s88 = sphi 0, %s86
    %s89 = sphi 0, %s88
    %s103 = sphi 0, %s89
    %s109 = sphi 0, %s111
    %s112 = sphi 0, %s109
    %s113 = sphi 0, %s112
    %s129 = sphi 0, %s113
  $region4: #{_forward_rows_impl.1} parent=0 // loop_header_branch
    %13 = sbr.rel (%p11) target = $region8
  $region5: #{_forward_rows_impl.1} parent=0 // loop_body
    %s15 = ssub.s32 %s10, 1
    %s16 = ssub.s32 %s10, 2
    %s17 = sadd.s32 %s10, 1
    %s18 = ssub.s32 %s10, %s17
    %p19 = scmp.eq.s32.totalorder %s18, 0
    %s21 = sadd.s32 %s20, 1
    %s22 = scalar_select %p19, %s20, %s21
    %p25 = pneg %p19
    %p26 = scmp.eq.s32.totalorder %s10, 1
    %p27 = por %p25, %p26
    %p28 = scmp.ne.s32.totalorder %s20, %s23
    %p29 = scmp.eq.s32.totalorder %s10, 0
    %p30 = por %p28, %p29
    %p31 = scmp.ne.s32.totalorder %s20, %s23
    %p32 = scmp.eq.s32.totalorder %s15, 1
    %p33 = por %p31, %p32
    %p34 = scmp.ne.s32.totalorder %s23, %s24
    %p35 = scmp.eq.s32.totalorder %s15, 0
    %p36 = por %p34, %p35
    %p37 = scmp.ne.s32.totalorder %s23, %s24
    %p38 = scmp.eq.s32.totalorder %s16, 1
    %p39 = por %p37, %p38
    %p41 = scmp.ne.s32.totalorder %s24, %s40
    %p42 = scmp.eq.s32.totalorder %s16, 0
    %p43 = por %p41, %p42
    %s45 = sadd.s32 %s44, 1
    %p48 = scmp.eq.s32.totalorder %s10, 1
    %p49 = scmp.ne.s32.totalorder %s44, %s46
    %p50 = scmp.eq.s32.totalorder %s10, 0
    %p51 = por %p49, %p50
    %p52 = scmp.ne.s32.totalorder %s44, %s46
    %p53 = scmp.eq.s32.totalorder %s15, 1
    %p54 = por %p52, %p53
    %p55 = scmp.ne.s32.totalorder %s46, %s47
    %p56 = scmp.eq.s32.totalorder %s15, 0
    %p57 = por %p55, %p56
    %p58 = scmp.ne.s32.totalorder %s46, %s47
    %p59 = scmp.eq.s32.totalorder %s16, 1
    %p60 = por %p58, %p59
    %p62 = scmp.ne.s32.totalorder %s47, %s61
    %p63 = scmp.eq.s32.totalorder %s16, 0
    %p64 = por %p62, %p63
    %s66 = sadd.s32 %s65, 1
    %p69 = scmp.eq.s32.totalorder %s10, 1
    %p70 = scmp.ne.s32.totalorder %s65, %s67
    %p71 = scmp.eq.s32.totalorder %s10, 0
    %p72 = por %p70, %p71
    %p73 = scmp.ne.s32.totalorder %s65, %s67
    %p74 = scmp.eq.s32.totalorder %s15, 1
    %p75 = por %p73, %p74
    %p76 = scmp.ne.s32.totalorder %s67, %s68
    %p77 = scmp.eq.s32.totalorder %s15, 0
    %p78 = por %p76, %p77
    %p79 = scmp.ne.s32.totalorder %s67, %s68
    %p80 = scmp.eq.s32.totalorder %s16, 1
    %p81 = por %p79, %p80
    %p83 = scmp.ne.s32.totalorder %s68, %s82
    %p84 = scmp.eq.s32.totalorder %s16, 0
    %p85 = por %p83, %p84
    %s87 = sadd.s32 %s86, 1
    %p90 = scmp.eq.s32.totalorder %s10, 1
    %p91 = scmp.ne.s32.totalorder %s86, %s88
    %p92 = scmp.eq.s32.totalorder %s10, 0
    %p93 = por %p91, %p92
    %p94 = scmp.ne.s32.totalorder %s86, %s88
    %p95 = scmp.eq.s32.totalorder %s15, 1
    %p96 = por %p94, %p95
    %p97 = scmp.ne.s32.totalorder %s88, %s89
    %p98 = scmp.eq.s32.totalorder %s15, 0
    %p99 = por %p97, %p98
    %p100 = scmp.ne.s32.totalorder %s88, %s89
    %p101 = scmp.eq.s32.totalorder %s16, 1
    %p102 = por %p100, %p101
    %p104 = scmp.ne.s32.totalorder %s89, %s103
    %p105 = scmp.eq.s32.totalorder %s16, 0
    %p106 = por %p104, %p105
    %s107 = ssub.s32 %s10, %s17
    %p108 = scmp.eq.s32.totalorder %s107, 0
    %s110 = sadd.s32 %s109, 1
    %s111 = scalar_select %p108, %s109, %s110
    %p114 = pneg %p108
    %p115 = scmp.eq.s32.totalorder %s10, 1
    %p116 = por %p114, %p115
    %p117 = scmp.ne.s32.totalorder %s109, %s112
    %p118 = scmp.eq.s32.totalorder %s10, 0
    %p119 = por %p117, %p118
    %p120 = scmp.ne.s32.totalorder %s109, %s112
    %p121 = scmp.eq.s32.totalorder %s15, 1
    %p122 = por %p120, %p121
    %p123 = scmp.ne.s32.totalorder %s112, %s113
    %p124 = scmp.eq.s32.totalorder %s15, 0
    %p125 = por %p123, %p124
    %p126 = scmp.ne.s32.totalorder %s112, %s113
    %p127 = scmp.eq.s32.totalorder %s16, 1
    %p128 = por %p126, %p127
    %p130 = scmp.ne.s32.totalorder %s113, %s129
    %p131 = scmp.eq.s32.totalorder %s16, 0
    %p132 = por %p130, %p131
    %p133 = scmp.le.s32.totalorder 1, %s10
    %p134 = scmp.lt.s32.totalorder %s10, 3
    %p135 = pnand %p133, %p134
    %p136 = pneg %p135
    // Predicated region
    $region9: #{_forward_rows_impl.1} parent=5 // pred_check
      _
    $region10: #{_forward_rows_impl.1} parent=5 // pred_check_branch
      %138 = sbr.rel (%p135) target = $region12
    $region11: #{_forward_rows_impl.1} parent=5 // pred_region
      %s139 = ssub.s32 %s10, 1
      // Predicated region
      $region13: #{_forward_rows_impl.1} parent=11 // pred_check
        %p140 = pneg %p57
      $region14: #{_forward_rows_impl.1} parent=11 // pred_check_branch
        %142 = sbr.rel (%p140) target = $region16
      $region15: #{_forward_rows_impl.1} parent=11 // pred_region
        _
      $region16: #{_forward_rows_impl.1} parent=11 // pred_fallthru
        _
      // Predicated region
      $region17: #{_forward_rows_impl.1} parent=11 // pred_check
        %p143 = pneg %p78
      $region18: #{_forward_rows_impl.1} parent=11 // pred_check_branch
        %145 = sbr.rel (%p143) target = $region20
      $region19: #{_forward_rows_impl.1} parent=11 // pred_region
        _
      $region20: #{_forward_rows_impl.1} parent=11 // pred_fallthru
        _
      // Predicated region
      $region21: #{_forward_rows_impl.1} parent=11 // pred_check
        %p146 = pneg %p99
      $region22: #{_forward_rows_impl.1} parent=11 // pred_check_branch
        %148 = sbr.rel (%p146) target = $region24
      $region23: #{_forward_rows_impl.1} parent=11 // pred_region
        _
      $region24: #{_forward_rows_impl.1} parent=11 // pred_fallthru
        _
    $region12: #{_forward_rows_impl.1} parent=5 // pred_fallthru
      _
    %p149 = scmp.lt.s32.totalorder %s10, 2
    // Predicated region
    $region25: #{_forward_rows_impl.1} parent=5 // pred_check
      %p150 = pneg %p149
    $region26: #{_forward_rows_impl.1} parent=5 // pred_check_branch
      %152 = sbr.rel (%p150) target = $region28
    $region27: #{_forward_rows_impl.1} parent=5 // pred_region
      // Predicated region
      $region29: #{_forward_rows_impl.1} parent=27 // pred_check
        %p153 = pneg %p30
      $region30: #{_forward_rows_impl.1} parent=27 // pred_check_branch
        %155 = sbr.rel (%p153) target = $region32
      $region31: #{_forward_rows_impl.1} parent=27 // pred_region
        %s156 = smul.u32 8, %s10
        %p157 = scmp.lt.s32.totalorder %s156, 15
        %s158 = scalar_select %p157, %s156, 15
        %s159 = smul.addr %s158, 8
        %s160 = scalar_lea.vmem %s0, %s159
        %s161 = smul.u32 8, %s10
      $region32: #{_forward_rows_impl.1} parent=27 // pred_fallthru
        _
    $region28: #{_forward_rows_impl.1} parent=5 // pred_fallthru
      _
    %p162 = scmp.le.s32.totalorder 1, %s10
    %p163 = scmp.lt.s32.totalorder %s10, 3
    %p164 = pnand %p162, %p163
    %p165 = pneg %p164
    // Predicated region
    $region33: #{_forward_rows_impl.1} parent=5 // pred_check
      _
    $region34: #{_forward_rows_impl.1} parent=5 // pred_check_branch
      %167 = sbr.rel (%p164) target = $region36
    $region35: #{_forward_rows_impl.1} parent=5 // pred_region
      %s168 = ssub.s32 %s10, 1
      %s169 = smul.u32 8, %s15
      %p170 = scmp.lt.s32.totalorder %s169, 15
      %s171 = scalar_select %p170, %s169, 15
      %s172 = smul.addr %s171, 8
      %s173 = scalar_lea.vmem %s0, %s172
      %p174 = pneg %p36
      %p175 = pneg %p33
      %p176 = pneg %p57
      %p177 = pneg %p54
      %p178 = pneg %p78
      %p179 = pneg %p75
      %p180 = pneg %p99
      %p181 = pneg %p96
      %p182 = pneg %p125
      %p183 = pneg %p122
      %s184 = smul.u32 8, %s15
      %p185 = scmp.lt.s32.totalorder %s184, 15
      %s186 = scalar_select %p185, %s184, 15
      %s187 = smul.addr %s186, 8
      %s188 = scalar_lea.vmem %s4, %s187
      %s189 = smul.u32 8, %s15
      %p190 = scmp.lt.s32.totalorder %s189, 15
      %s191 = scalar_select %p190, %s189, 15
      %s192 = smul.addr %s191, 8
      %s193 = scalar_lea.vmem %s0, %s192
      %s194 = smul.u32 8, %s15
      %s195 = smul.u32 8, %s15
      %p196 = scmp.lt.s32.totalorder %s195, 15
      %s197 = scalar_select %p196, %s195, 15
      %s198 = smul.addr %s197, 8
      %s199 = scalar_lea.vmem %s4, %s198
      %s200 = smul.u32 8, %s15
      %v201 = vld [vmem:[%s193] sm:$0xff]
      %v202 = vld [vmem:[%s193 + $0x8] sm:$0xff]
      %v203 = vld [vmem:[%s193 + $0x10] sm:$0xff]
      %v204 = vld [vmem:[%s193 + $0x18] sm:$0xff]
      %v205 = vld [vmem:[%s193 + $0x20] sm:$0xff]
      %v206 = vld [vmem:[%s193 + $0x28] sm:$0xff]
      %v207 = vld [vmem:[%s193 + $0x30] sm:$0xff]
      %v208 = vld [vmem:[%s193 + $0x38] sm:$0xff]
      %v209 = vld [vmem:[%s1] sm:$0xff]
      %v210 = vld [vmem:[%s1 + $0x8] sm:$0xff]
      %v211 = vld [vmem:[%s1 + $0x10] sm:$0xff]
      %v212 = vld [vmem:[%s1 + $0x18] sm:$0xff]
      %v213 = vld [vmem:[%s1 + $0x20] sm:$0xff]
      %v214 = vld [vmem:[%s1 + $0x28] sm:$0xff]
      %v215 = vld [vmem:[%s1 + $0x30] sm:$0xff]
      %v216 = vld [vmem:[%s1 + $0x38] sm:$0xff]
      %v217 = vld [vmem:[%s1 + $0x40] sm:$0xff]
      %v218 = vld [vmem:[%s1 + $0x48] sm:$0xff]
      %v219 = vld [vmem:[%s1 + $0x50] sm:$0xff]
      %v220 = vld [vmem:[%s1 + $0x58] sm:$0xff]
      %v221 = vld [vmem:[%s1 + $0x60] sm:$0xff]
      %v222 = vld [vmem:[%s1 + $0x68] sm:$0xff]
      %v223 = vld [vmem:[%s1 + $0x70] sm:$0xff]
      %v224 = vld [vmem:[%s1 + $0x78] sm:$0xff]
      %225 = vmatpush.msra.mxu0 %v224
      %226 = vmatpush.msra.mxu0 %v223
      %227 = vmatpush.msra.mxu0 %v222
      %228 = vmatpush.msra.mxu0 %v221
      %229 = vmatpush.msra.mxu0 %v220
      %230 = vmatpush.msra.mxu0 %v219
      %231 = vmatpush.msra.mxu0 %v218
      %232 = vmatpush.msra.mxu0 %v217
      %233 = vmatpush.msra.mxu0 %v216
      %234 = vmatpush.msra.mxu0 %v215
      %235 = vmatpush.msra.mxu0 %v214
      %236 = vmatpush.msra.mxu0 %v213
      %237 = vmatpush.msra.mxu0 %v212
      %238 = vmatpush.msra.mxu0 %v211
      %239 = vmatpush.msra.mxu0 %v210
      %240 = vmatpush.msra.mxu0 %v209
      %241 = vmatmul.f32.gmra.mxu0 %v201
      %v242 = vpop.f32.mrf.mxu0
      %v243 = vadd.f32 0.0, %v242
      %244 = vmatmul.f32.gmra.mxu0 %v202
      %v245 = vpop.f32.mrf.mxu0
      %v246 = vadd.f32 0.0, %v245
      %247 = vmatmul.f32.gmra.mxu0 %v203
      %v248 = vpop.f32.mrf.mxu0
      %v249 = vadd.f32 0.0, %v248
      %250 = vmatmul.f32.gmra.mxu0 %v204
      %v251 = vpop.f32.mrf.mxu0
      %v252 = vadd.f32 0.0, %v251
      %253 = vmatmul.f32.gmra.mxu0 %v205
      %v254 = vpop.f32.mrf.mxu0
      %v255 = vadd.f32 0.0, %v254
      %256 = vmatmul.f32.gmra.mxu0 %v206
      %v257 = vpop.f32.mrf.mxu0
      %v258 = vadd.f32 0.0, %v257
      %259 = vmatmul.f32.gmra.mxu0 %v207
      %v260 = vpop.f32.mrf.mxu0
      %v261 = vadd.f32 0.0, %v260
      %262 = vmatmul.f32.gmra.mxu0 %v208
      %v263 = vpop.f32.mrf.mxu0
      %v264 = vadd.f32 0.0, %v263
      %265 = vdwg.mxu0
      %v266 = vmax.f32 %v243, 0.0
      %v267 = vmax.f32 %v246, 0.0
      %v268 = vmax.f32 %v249, 0.0
      %v269 = vmax.f32 %v252, 0.0
      %v270 = vmax.f32 %v255, 0.0
      %v271 = vmax.f32 %v258, 0.0
      %v272 = vmax.f32 %v261, 0.0
      %v273 = vmax.f32 %v264, 0.0
      %v274 = vld [vmem:[%s2] sm:$0xff]
      %v275 = vld [vmem:[%s2 + $0x8] sm:$0xff]
      %v276 = vld [vmem:[%s2 + $0x10] sm:$0xff]
      %v277 = vld [vmem:[%s2 + $0x18] sm:$0xff]
      %v278 = vld [vmem:[%s2 + $0x20] sm:$0xff]
      %v279 = vld [vmem:[%s2 + $0x28] sm:$0xff]
      %v280 = vld [vmem:[%s2 + $0x30] sm:$0xff]
      %v281 = vld [vmem:[%s2 + $0x38] sm:$0xff]
      %v282 = vld [vmem:[%s2 + $0x40] sm:$0xff]
      %vm283 = vcmask 588800
      %v285 = vsel %vm283, %v266, 0
      %v288 = vsel %vm283, %v267, 0
      %v291 = vsel %vm283, %v268, 0
      %v294 = vsel %vm283, %v269, 0
      %v297 = vsel %vm283, %v270, 0
      %v300 = vsel %vm283, %v271, 0
      %v303 = vsel %vm283, %v272, 0
      %v306 = vsel %vm283, %v273, 0
      %308 = vmatpush.msra.mxu0 0.0
      %309 = vmatpush.msra.mxu0 0.0
      %310 = vmatpush.msra.mxu0 0.0
      %311 = vmatpush.msra.mxu0 0.0
      %312 = vmatpush.msra.mxu0 0.0
      %313 = vmatpush.msra.mxu0 0.0
      %314 = vmatpush.msra.mxu0 0.0
      %315 = vmatpush.msra.mxu0 %v282
      %316 = vmatpush.msra.mxu0 %v281
      %317 = vmatpush.msra.mxu0 %v280
      %318 = vmatpush.msra.mxu0 %v279
      %319 = vmatpush.msra.mxu0 %v278
      %320 = vmatpush.msra.mxu0 %v277
      %321 = vmatpush.msra.mxu0 %v276
      %322 = vmatpush.msra.mxu0 %v275
      %323 = vmatpush.msra.mxu0 %v274
      %324 = vmatmul.f32.gmra.mxu0 %v285
      %v325 = vpop.f32.mrf.mxu0
      %v326 = vadd.f32 0.0, %v325
      %327 = vmatmul.f32.gmra.mxu0 %v288
      %v328 = vpop.f32.mrf.mxu0
      %v329 = vadd.f32 0.0, %v328
      %330 = vmatmul.f32.gmra.mxu0 %v291
      %v331 = vpop.f32.mrf.mxu0
      %v332 = vadd.f32 0.0, %v331
      %333 = vmatmul.f32.gmra.mxu0 %v294
      %v334 = vpop.f32.mrf.mxu0
      %v335 = vadd.f32 0.0, %v334
      %336 = vmatmul.f32.gmra.mxu0 %v297
      %v337 = vpop.f32.mrf.mxu0
      %v338 = vadd.f32 0.0, %v337
      %339 = vmatmul.f32.gmra.mxu0 %v300
      %v340 = vpop.f32.mrf.mxu0
      %v341 = vadd.f32 0.0, %v340
      %342 = vmatmul.f32.gmra.mxu0 %v303
      %v343 = vpop.f32.mrf.mxu0
      %v344 = vadd.f32 0.0, %v343
      %345 = vmatmul.f32.gmra.mxu0 %v306
      %v346 = vpop.f32.mrf.mxu0
      %v347 = vadd.f32 0.0, %v346
      %348 = vdwg.mxu0
      %v349 = vtanh.pop %v326
      %v350 = vtanh.pop %v329
      %v351 = vtanh.pop %v332
      %v352 = vtanh.pop %v335
      %v353 = vtanh.pop %v338
      %v354 = vtanh.pop %v341
      %v355 = vtanh.pop %v344
      %v356 = vtanh.pop %v347
      %v357 = vld [vmem:[%s3] sm:$0xff]
      %v358 = vld [vmem:[%s3 + $0x8] sm:$0xff]
      %v359 = vld [vmem:[%s3 + $0x10] sm:$0xff]
      %v360 = vld [vmem:[%s3 + $0x18] sm:$0xff]
      %v361 = vld [vmem:[%s3 + $0x20] sm:$0x1]
      %v362 = vperm.slane %v361, 0
      %vm363 = vcmask 261120
      %v365 = vsel %vm363, %v349, 0
      %v368 = vsel %vm363, %v350, 0
      %v371 = vsel %vm363, %v351, 0
      %v374 = vsel %vm363, %v352, 0
      %v377 = vsel %vm363, %v353, 0
      %v380 = vsel %vm363, %v354, 0
      %v383 = vsel %vm363, %v355, 0
      %v386 = vsel %vm363, %v356, 0
      %388 = vmatpush.msra.mxu0 0.0
      %389 = vmatpush.msra.mxu0 0.0
      %390 = vmatpush.msra.mxu0 0.0
      %391 = vmatpush.msra.mxu0 0.0
      %392 = vmatpush.msra.mxu0 0.0
      %393 = vmatpush.msra.mxu0 0.0
      %394 = vmatpush.msra.mxu0 0.0
      %395 = vmatpush.msra.mxu0 0.0
      %396 = vmatpush.msra.mxu0 0.0
      %397 = vmatpush.msra.mxu0 0.0
      %398 = vmatpush.msra.mxu0 0.0
      %399 = vmatpush.msra.mxu0 0.0
      %400 = vmatpush.msra.mxu0 %v360
      %401 = vmatpush.msra.mxu0 %v359
      %402 = vmatpush.msra.mxu0 %v358
      %403 = vmatpush.msra.mxu0 %v357
      %404 = vmatmul.f32.gmra.mxu0 %v365
      %v405 = vpop.f32.mrf.mxu0
      %v406 = vadd.f32 %v362, %v405
      %407 = vmatmul.f32.gmra.mxu0 %v368
      %v408 = vpop.f32.mrf.mxu0
      %v409 = vadd.f32 %v362, %v408
      %410 = vmatmul.f32.gmra.mxu0 %v371
      %v411 = vpop.f32.mrf.mxu0
      %v412 = vadd.f32 %v362, %v411
      %413 = vmatmul.f32.gmra.mxu0 %v374
      %v414 = vpop.f32.mrf.mxu0
      %v415 = vadd.f32 %v362, %v414
      %416 = vmatmul.f32.gmra.mxu0 %v377
      %v417 = vpop.f32.mrf.mxu0
      %v418 = vadd.f32 %v362, %v417
      %419 = vmatmul.f32.gmra.mxu0 %v380
      %v420 = vpop.f32.mrf.mxu0
      %v421 = vadd.f32 %v362, %v420
      %422 = vmatmul.f32.gmra.mxu0 %v383
      %v423 = vpop.f32.mrf.mxu0
      %v424 = vadd.f32 %v362, %v423
      %425 = vmatmul.f32.gmra.mxu0 %v386
      %v426 = vpop.f32.mrf.mxu0
      %v427 = vadd.f32 %v362, %v426
      %428 = vdwg.mxu0
      %v429 = vmax.f32 %v406, -20.0
      %v430 = vmax.f32 %v409, -20.0
      %v431 = vmax.f32 %v412, -20.0
      %v432 = vmax.f32 %v415, -20.0
      %v433 = vmax.f32 %v418, -20.0
      %v434 = vmax.f32 %v421, -20.0
      %v435 = vmax.f32 %v424, -20.0
      %v436 = vmax.f32 %v427, -20.0
      %v437 = vmin.f32 %v429, 20.0
      %v438 = vmin.f32 %v430, 20.0
      %v439 = vmin.f32 %v431, 20.0
      %v440 = vmin.f32 %v432, 20.0
      %v441 = vmin.f32 %v433, 20.0
      %v442 = vmin.f32 %v434, 20.0
      %v443 = vmin.f32 %v435, 20.0
      %v444 = vmin.f32 %v436, 20.0
      %446 = vset.pattern.permute.xlu0 82
      %447 = vperm.xlu0 %446, %v201
      %v448 = vpop.permute.xlu0 %447
      %451 = vset.pattern.permute.xlu0 82
      %452 = vperm.xlu0 %451, %v202
      %v453 = vpop.permute.xlu0 %452
      %456 = vset.pattern.permute.xlu0 82
      %457 = vperm.xlu0 %456, %v203
      %v458 = vpop.permute.xlu0 %457
      %461 = vset.pattern.permute.xlu0 82
      %462 = vperm.xlu0 %461, %v204
      %v463 = vpop.permute.xlu0 %462
      %466 = vset.pattern.permute.xlu0 82
      %467 = vperm.xlu0 %466, %v205
      %v468 = vpop.permute.xlu0 %467
      %471 = vset.pattern.permute.xlu0 82
      %472 = vperm.xlu0 %471, %v206
      %v473 = vpop.permute.xlu0 %472
      %476 = vset.pattern.permute.xlu0 82
      %477 = vperm.xlu0 %476, %v207
      %v478 = vpop.permute.xlu0 %477
      %481 = vset.pattern.permute.xlu0 82
      %482 = vperm.xlu0 %481, %v208
      %v483 = vpop.permute.xlu0 %482
      %v485 = vmul.f32 %v448, %v201
      %v486 = vmul.f32 %v453, %v202
      %v487 = vmul.f32 %v458, %v203
      %v488 = vmul.f32 %v463, %v204
      %v489 = vmul.f32 %v468, %v205
      %v490 = vmul.f32 %v473, %v206
      %v491 = vmul.f32 %v478, %v207
      %v492 = vmul.f32 %v483, %v208
      %493 = vset.pattern.permute.xlu0 83
      %494 = vperm.xlu0 %493, %v201
      %v495 = vpop.permute.xlu0 %494
      %497 = vset.pattern.permute.xlu0 83
      %498 = vperm.xlu0 %497, %v202
      %v499 = vpop.permute.xlu0 %498
      %501 = vset.pattern.permute.xlu0 83
      %502 = vperm.xlu0 %501, %v203
      %v503 = vpop.permute.xlu0 %502
      %505 = vset.pattern.permute.xlu0 83
      %506 = vperm.xlu0 %505, %v204
      %v507 = vpop.permute.xlu0 %506
      %509 = vset.pattern.permute.xlu0 83
      %510 = vperm.xlu0 %509, %v205
      %v511 = vpop.permute.xlu0 %510
      %513 = vset.pattern.permute.xlu0 83
      %514 = vperm.xlu0 %513, %v206
      %v515 = vpop.permute.xlu0 %514
      %517 = vset.pattern.permute.xlu0 83
      %518 = vperm.xlu0 %517, %v207
      %v519 = vpop.permute.xlu0 %518
      %521 = vset.pattern.permute.xlu0 83
      %522 = vperm.xlu0 %521, %v208
      %v523 = vpop.permute.xlu0 %522
      %v525 = vmul.f32 %v495, %v437
      %v526 = vmul.f32 %v499, %v438
      %v527 = vmul.f32 %v503, %v439
      %v528 = vmul.f32 %v507, %v440
      %v529 = vmul.f32 %v511, %v441
      %v530 = vmul.f32 %v515, %v442
      %v531 = vmul.f32 %v519, %v443
      %v532 = vmul.f32 %v523, %v444
      %541 = vrot.lane.b32.xlu0 %v525, 50
      %v542 = vpop.permute.xlu0 %541
      %543 = vrot.lane.b32.xlu0 %v526, 50
      %v544 = vpop.permute.xlu0 %543
      %545 = vrot.lane.b32.xlu0 %v527, 50
      %v546 = vpop.permute.xlu0 %545
      %547 = vrot.lane.b32.xlu0 %v528, 50
      %v548 = vpop.permute.xlu0 %547
      %549 = vrot.lane.b32.xlu0 %v529, 50
      %v550 = vpop.permute.xlu0 %549
      %551 = vrot.lane.b32.xlu0 %v530, 50
      %v552 = vpop.permute.xlu0 %551
      %553 = vrot.lane.b32.xlu0 %v531, 50
      %v554 = vpop.permute.xlu0 %553
      %555 = vrot.lane.b32.xlu0 %v532, 50
      %v556 = vpop.permute.xlu0 %555
      %v565 = vsub.f32 %v485, %v542
      %v566 = vsub.f32 %v486, %v544
      %v567 = vsub.f32 %v487, %v546
      %v568 = vsub.f32 %v488, %v548
      %v569 = vsub.f32 %v489, %v550
      %v570 = vsub.f32 %v490, %v552
      %v571 = vsub.f32 %v491, %v554
      %v572 = vsub.f32 %v492, %v556
      %573 = vrot.lane.b32.xlu0 %v201, 62
      %v574 = vpop.permute.xlu0 %573
      %575 = vrot.lane.b32.xlu0 %v202, 62
      %v576 = vpop.permute.xlu0 %575
      %577 = vrot.lane.b32.xlu0 %v203, 62
      %v578 = vpop.permute.xlu0 %577
      %579 = vrot.lane.b32.xlu0 %v204, 62
      %v580 = vpop.permute.xlu0 %579
      %581 = vrot.lane.b32.xlu0 %v205, 62
      %v582 = vpop.permute.xlu0 %581
      %583 = vrot.lane.b32.xlu0 %v206, 62
      %v584 = vpop.permute.xlu0 %583
      %585 = vrot.lane.b32.xlu0 %v207, 62
      %v586 = vpop.permute.xlu0 %585
      %587 = vrot.lane.b32.xlu0 %v208, 62
      %v588 = vpop.permute.xlu0 %587
      %v597 = vsub.f32 %v406, %v574
      %v598 = vsub.f32 %v409, %v576
      %v599 = vsub.f32 %v412, %v578
      %v600 = vsub.f32 %v415, %v580
      %v601 = vsub.f32 %v418, %v582
      %v602 = vsub.f32 %v421, %v584
      %v603 = vsub.f32 %v424, %v586
      %v604 = vsub.f32 %v427, %v588
      %v605 = vmul.f32 %v597, %v597
      %v606 = vmul.f32 %v598, %v598
      %v607 = vmul.f32 %v599, %v599
      %v608 = vmul.f32 %v600, %v600
      %v609 = vmul.f32 %v601, %v601
      %v610 = vmul.f32 %v602, %v602
      %v611 = vmul.f32 %v603, %v603
      %v612 = vmul.f32 %v604, %v604
      %v613 = vmul.f32 %v605, 2.5
      %v614 = vmul.f32 %v606, 2.5
      %v615 = vmul.f32 %v607, 2.5
      %v616 = vmul.f32 %v608, 2.5
      %v617 = vmul.f32 %v609, 2.5
      %v618 = vmul.f32 %v610, 2.5
      %v619 = vmul.f32 %v611, 2.5
      %v620 = vmul.f32 %v612, 2.5
      %629 = vrot.lane.b32.xlu0 %v565, 110
      %v630 = vpop.permute.xlu0 %629
      %631 = vrot.lane.b32.xlu0 %v566, 110
      %v632 = vpop.permute.xlu0 %631
      %633 = vrot.lane.b32.xlu0 %v567, 110
      %v634 = vpop.permute.xlu0 %633
      %635 = vrot.lane.b32.xlu0 %v568, 110
      %v636 = vpop.permute.xlu0 %635
      %637 = vrot.lane.b32.xlu0 %v569, 110
      %v638 = vpop.permute.xlu0 %637
      %639 = vrot.lane.b32.xlu0 %v570, 110
      %v640 = vpop.permute.xlu0 %639
      %641 = vrot.lane.b32.xlu0 %v571, 110
      %v642 = vpop.permute.xlu0 %641
      %643 = vrot.lane.b32.xlu0 %v572, 110
      %v644 = vpop.permute.xlu0 %643
      %661 = vrot.lane.b32.xlu0 %v613, 48
      %v662 = vpop.permute.xlu0 %661
      %663 = vrot.lane.b32.xlu0 %v614, 48
      %v664 = vpop.permute.xlu0 %663
      %665 = vrot.lane.b32.xlu0 %v615, 48
      %v666 = vpop.permute.xlu0 %665
      %667 = vrot.lane.b32.xlu0 %v616, 48
      %v668 = vpop.permute.xlu0 %667
      %669 = vrot.lane.b32.xlu0 %v617, 48
      %v670 = vpop.permute.xlu0 %669
      %671 = vrot.lane.b32.xlu0 %v618, 48
      %v672 = vpop.permute.xlu0 %671
      %673 = vrot.lane.b32.xlu0 %v619, 48
      %v674 = vpop.permute.xlu0 %673
      %675 = vrot.lane.b32.xlu0 %v620, 48
      %v676 = vpop.permute.xlu0 %675
      %v685 = vsel %vm363, %v349, %v630
      %v686 = vsel %vm363, %v350, %v632
      %v687 = vsel %vm363, %v351, %v634
      %v688 = vsel %vm363, %v352, %v636
      %v689 = vsel %vm363, %v353, %v638
      %v690 = vsel %vm363, %v354, %v640
      %v691 = vsel %vm363, %v355, %v642
      %v692 = vsel %vm363, %v356, %v644
      %vm693 = vcmask 392192
      %v694 = vsel %vm693, %v685, %v662
      %v695 = vsel %vm693, %v686, %v664
      %v696 = vsel %vm693, %v687, %v666
      %v697 = vsel %vm693, %v688, %v668
      %v698 = vsel %vm693, %v689, %v670
      %v699 = vsel %vm693, %v690, %v672
      %v700 = vsel %vm693, %v691, %v674
      %v701 = vsel %vm693, %v692, %v676
      %vm702 = vcmask 523264
      %v703 = vsel %vm702, %v694, 0.0
      %v704 = vsel %vm702, %v695, 0.0
      %v705 = vsel %vm702, %v696, 0.0
      %v706 = vsel %vm702, %v697, 0.0
      %v707 = vsel %vm702, %v698, 0.0
      %v708 = vsel %vm702, %v699, 0.0
      %v709 = vsel %vm702, %v700, 0.0
      %v710 = vsel %vm702, %v701, 0.0
      %711 = vst [vmem:[%s199] sm:$0xff] %v703
      %712 = vst [vmem:[%s199 + $0x8] sm:$0xff] %v704
      %713 = vst [vmem:[%s199 + $0x10] sm:$0xff] %v705
      %714 = vst [vmem:[%s199 + $0x18] sm:$0xff] %v706
      %715 = vst [vmem:[%s199 + $0x20] sm:$0xff] %v707
      %716 = vst [vmem:[%s199 + $0x28] sm:$0xff] %v708
      %717 = vst [vmem:[%s199 + $0x30] sm:$0xff] %v709
      %718 = vst [vmem:[%s199 + $0x38] sm:$0xff] %v710
      %s719 = smul.u32 8, %s15
      %p720 = scmp.lt.s32.totalorder %s719, 15
      %s721 = scalar_select %p720, %s719, 15
      %s722 = smul.addr %s721, 8
      %s723 = scalar_lea.vmem %s4, %s722
      // Predicated region
      $region37: #{_forward_rows_impl.1} parent=35 // pred_check
        %p724 = pneg %p122
      $region38: #{_forward_rows_impl.1} parent=35 // pred_check_branch
        %726 = sbr.rel (%p724) target = $region40
      $region39: #{_forward_rows_impl.1} parent=35 // pred_region
        %s727 = smul.u32 8, %s15
      $region40: #{_forward_rows_impl.1} parent=35 // pred_fallthru
        _
    $region36: #{_forward_rows_impl.1} parent=5 // pred_fallthru
      _
    %p728 = scmp.le.s32.totalorder 2, %s10
    // Predicated region
    $region41: #{_forward_rows_impl.1} parent=5 // pred_check
      %p729 = pneg %p728
    $region42: #{_forward_rows_impl.1} parent=5 // pred_check_branch
      %731 = sbr.rel (%p729) target = $region44
    $region43: #{_forward_rows_impl.1} parent=5 // pred_region
      %s732 = ssub.s32 %s10, 2
      // Predicated region
      $region45: #{_forward_rows_impl.1} parent=43 // pred_check
        %p733 = pneg %p128
      $region46: #{_forward_rows_impl.1} parent=43 // pred_check_branch
        %735 = sbr.rel (%p733) target = $region48
      $region47: #{_forward_rows_impl.1} parent=43 // pred_region
        %s736 = smul.u32 8, %s16
        %p737 = scmp.lt.s32.totalorder %s736, 15
        %s738 = scalar_select %p737, %s736, 15
        %s739 = smul.addr %s738, 8
        %s740 = scalar_lea.vmem %s4, %s739
      $region48: #{_forward_rows_impl.1} parent=43 // pred_fallthru
        _
    $region44: #{_forward_rows_impl.1} parent=5 // pred_fallthru
      _
  $region6: #{_forward_rows_impl.1} parent=0 // loop_footer
    %s14 = sadd.s32 1, %s10
  $region7: #{_forward_rows_impl.1} parent=0 // loop_footer_branch
    %9 = sbr.rel target = $region3
  $region8: #{_forward_rows_impl.1} parent=0 // loop_exit
    _

</llo_original>
